<compile_context>
chip_gen: v5e
topology: v5e:2x2
jax: 0.10.0
libtpu: 0.0.40
codegen_flags: <defaults>
</compile_context>

<pallas_src>
import jax
import jax.numpy as jnp
from jax.experimental import pallas as pl
from jax.experimental.pallas import tpu as pltpu


def _identity_copy_kernel(x_ref, o_ref):
    # The unflatten carries no arithmetic; preserve values/dtype exactly.
    o_ref[...] = x_ref[...]


def _pick_tiles(b, feat):
    # Block dims must be (8, 128)-dense or equal to the full array dims.
    #  - batch tile: full dim when small (always legal), else 256 rows
    #    (multiple of 8/16/32, so legal for f32/bf16/int8 sublane packing),
    #  - feature tile: full dim when small, else 2048 lanes (multiple of 128).
    # 256 x 2048 x 4 B = 2 MiB per buffer -> 4 double-buffered buffers ~ 8 MiB,
    # comfortably inside v7x's 32 MiB scoped-VMEM default (64 MiB physical)
    # and v5e's 16 MiB scoped default.
    bm = b if b <= 256 else 256
    bn = feat if feat <= 2048 else 2048
    return bm, bn


def unflatten(x, channel, height, width):
    """Pallas equivalent of Unflatten(channel, height, width).forward(x).

    x: (B, F) (or any shape with leading batch dim and F = channel*height*width
       total trailing elements, mirroring torch .view flexibility).
    returns: (B, channel, height, width), same dtype/values as x.
    """
    b = x.shape[0]
    feat = channel * height * width
    x_flat = jnp.reshape(x, (b, feat))  # glue: metadata-only flatten

    bm, bn = _pick_tiles(b, feat)
    grid = (pl.cdiv(b, bm), pl.cdiv(feat, bn))

    out_flat = pl.pallas_call(
        _identity_copy_kernel,
        out_shape=jax.ShapeDtypeStruct((b, feat), x_flat.dtype),
        grid=grid,
        in_specs=[pl.BlockSpec((bm, bn), lambda i, j: (i, j))],
        out_specs=pl.BlockSpec((bm, bn), lambda i, j: (i, j)),
        input_output_aliases={0: 0},  # reuse the input HBM buffer for the output
        compiler_params=pltpu.CompilerParams(
            dimension_semantics=("parallel", "parallel"),
        ),
    )(x_flat)

    # glue: the actual unflatten (metadata-only reshape, matches torch .view)
    return jnp.reshape(out_flat, (b, channel, height, width))


if __name__ == "__main__":
    # Unflatten(channel=4, height=16, width=16) applied to a (B, C*H*W) tensor,
    # as the MNIST decoder does right after its fully-connected layer.
    B, C, H, W = 2, 4, 16, 16
    key = jax.random.PRNGKey(0)
    x = jax.random.normal(key, (B, C * H * W), dtype=jnp.float32)

    # Reference (torch .view == jnp.reshape) — computed BEFORE the kernel call
    # because the kernel aliases/donates the flattened input buffer.
    y_ref = jnp.reshape(x, (B, C, H, W))

    y = unflatten(x, C, H, W)
    y = jax.block_until_ready(y)

    assert y.shape == (B, C, H, W)
    assert y.dtype == jnp.float32
    assert bool(jnp.array_equal(y, y_ref))

    # Secondary check exercising the 2-D tiled grid (feat > one lane tile).
    B2, C2, H2, W2 = 16, 8, 32, 32  # feat = 8192 -> grid (1, 4)
    x2 = jax.random.normal(jax.random.PRNGKey(1), (B2, C2 * H2 * W2), jnp.float32)
    y2_ref = jnp.reshape(x2, (B2, C2, H2, W2))
    y2 = jax.block_until_ready(unflatten(x2, C2, H2, W2))
    assert y2.shape == (B2, C2, H2, W2)
    assert bool(jnp.array_equal(y2, y2_ref))

    print("KERNEL_OK")
</pallas_src>

<mosaic_0001>
module attributes {stable_mosaic.version = 11 : i64} {
  func.func @_identity_copy_kernel(%arg0: i32, %arg1: i32, %arg2: memref<2x1024xf32, #tpu.memory_space<vmem>>, %arg3: memref<2x1024xf32, #tpu.memory_space<vmem>>) attributes {dimension_semantics = [#tpu.dimension_semantics<parallel>, #tpu.dimension_semantics<parallel>], iteration_bounds = array<i64: 1, 1>, scalar_prefetch = 0 : i64, scratch_operands = 0 : i64, tpu.core_type = #tpu.core_type<tc>, window_params = [{transform_indices = @transform_0, window_bounds = array<i64: 2, 1024>}, {transform_indices = @transform_1, window_bounds = array<i64: 2, 1024>}]} {
    %c0 = arith.constant 0 : index
    %c0_0 = arith.constant 0 : index
    %0 = vector.load %arg2[%c0, %c0_0] : memref<2x1024xf32, #tpu.memory_space<vmem>>, vector<2x1024xf32>
    %c0_1 = arith.constant 0 : index
    %c0_2 = arith.constant 0 : index
    %1 = vector.load %arg3[%c0_1, %c0_2] : memref<2x1024xf32, #tpu.memory_space<vmem>>, vector<2x1024xf32>
    tpu.vector_store %arg3[%c0_1, %c0_2], %0 {strides = array<i32>} : memref<2x1024xf32, #tpu.memory_space<vmem>>, vector<2x1024xf32>,
    return
  }
  func.func @transform_0(%arg0: i32, %arg1: i32) -> (i32, i32) {
    %c0_i32 = arith.constant 0 : i32
    return %arg0, %arg1 : i32, i32
  }
  func.func @transform_1(%arg0: i32, %arg1: i32) -> (i32, i32) {
    %c0_i32 = arith.constant 0 : i32
    return %arg0, %arg1 : i32, i32
  }
}

</mosaic_0001>

<llo_original>
// kernel: tpu_custom_call.1
$region0: #{tpu_custom_call.1}
  #allocation0 [shape = 'u32[]', space=smem, size = 0x4, offset = 0x4, fixed_abs, tag = 'smem constant byte address 0x4 - core index']
  #allocation1 [shape = 'u32[72,128]{1,0:T(1,128)}', space=vmem, size = 0x9000, scoped, tag = 'internal scratch']
  %s0 = inlined_call_operand.hbm [shape: f32[2,1024], index: 0, kind: input, shape index: {}, may-alias: {0,1}]
  %s1 = inlined_call_operand.hbm [shape: f32[2,1024], index: 1, kind: output, shape index: {}, may-alias: {0,1}]
  %s2 = sld [smem:[#allocation0]]
  $region18: #{tpu_custom_call.1} parent=0
    _
  %s4 = ssub.s32 1, %s2
  %s5 = scalar_select 0, %s4, %s2
  $region1: #{tpu_custom_call.1} parent=0
    #allocation2 [shape = 'u8[8192]{0}', space=vmem, size = 0x2000, scoped, tag = 'input window, operand 0, single buffered']
    #allocation3 [shape = 's32[1]{0}', space=sflag, size = 0x4, scoped, tag = 'scoped memory for tpu_custom_call.1']
    #allocation4 [shape = 's32[1]{0}', space=sflag, size = 0x4, scoped, tag = 'scoped memory for tpu_custom_call.1']
    #allocation5 [shape = 'u8[8192]{0}', space=vmem, size = 0x2000, scoped, tag = 'output window, operand 0, single buffered']
    %6 = vsyncpa [#allocation3], 0
    %7 = vsyncpa [#allocation4], 0
    // Predicated region
    $region2: #{tpu_custom_call.1} parent=1 // pred_check
      _
    $region3: #{tpu_custom_call.1} parent=1 // pred_check_branch
      %9 = sbr.rel (0) target = $region5
    $region4: #{tpu_custom_call.1} parent=1 // pred_region
      %11 = vsyncadd [#allocation3], 0
      %s13 = sshll.u32 %s0, 4
      %s14 = int_to_ptr.hbm [resolvable:$true] %s13
      %s15 = sshll.u32 [#allocation2], 4
      %s16 = int_to_ptr.vmem [resolvable:$true] %s15
      %18 = dma.hbm_to_vmem [thread:$0]  %s14, 256, %s16, [#allocation3]
    $region5: #{tpu_custom_call.1} parent=1 // pred_fallthru
      _
    // Predicated region
    $region6: #{tpu_custom_call.1} parent=1 // pred_check
      _
    $region7: #{tpu_custom_call.1} parent=1 // pred_check_branch
      %20 = sbr.rel (0) target = $region9
    $region8: #{tpu_custom_call.1} parent=1 // pred_region
      %22 = dma.done [#allocation3], 256
    $region9: #{tpu_custom_call.1} parent=1 // pred_fallthru
      _
    %v23 = vld [vmem:[#allocation2] sm:$0xff]
    %v24 = vld [vmem:[#allocation2 + $0x8] sm:$0xff]
    %25 = vst [vmem:[#allocation5] sm:$0xff] %v23
    %26 = vst [vmem:[#allocation5 + $0x8] sm:$0xff] %v24
    // Predicated region
    $region10: #{tpu_custom_call.1} parent=1 // pred_check
      _
    $region11: #{tpu_custom_call.1} parent=1 // pred_check_branch
      %28 = sbr.rel (0) target = $region13
    $region12: #{tpu_custom_call.1} parent=1 // pred_region
      %30 = vsyncadd [#allocation4], 0
      %s32 = sshll.u32 [#allocation5], 4
      %s33 = int_to_ptr.vmem [resolvable:$true] %s32
      %s34 = sshll.u32 %s1, 4
      %s35 = int_to_ptr.hbm [resolvable:$true] %s34
      %37 = dma.vmem_to_hbm [thread:$0]  %s33, 256, %s35, [#allocation4]
    $region13: #{tpu_custom_call.1} parent=1 // pred_fallthru
      _
    // Predicated region
    $region14: #{tpu_custom_call.1} parent=1 // pred_check
      _
    $region15: #{tpu_custom_call.1} parent=1 // pred_check_branch
      %39 = sbr.rel (0) target = $region17
    $region16: #{tpu_custom_call.1} parent=1 // pred_region
      %41 = dma.done [#allocation4], 256
    $region17: #{tpu_custom_call.1} parent=1 // pred_fallthru
      _
    %42 = vsyncpa [#allocation3], 1
    %43 = vsyncpa [#allocation4], 1

</llo_original>
